<compile_context>
chip_gen: v6e
topology: v6e:2x2x1
jax: 0.10.0
libtpu: 0.0.40
codegen_flags: <defaults>
</compile_context>

<pallas_src>
import math
import jax
import jax.numpy as jnp
from jax import lax
from jax.experimental import pallas as pl
from jax.experimental.pallas import tpu as pltpu


def _choose_tiling(clip_dim, cross_dim, num_tokens, bytes_per_elem=2,
                   target_bytes=1 << 20, max_tokens_per_step=8, max_k_steps=8):
    """Pick (tokens_per_step, k_steps) so each grid step streams >= ~1 MiB of
    contiguous weight, while large configs also get several pipeline stages
    per TensorCore (the token axis is split across cores on v7x megacore)."""
    per_token = clip_dim * cross_dim * bytes_per_elem
    if per_token >= 2 * target_bytes and clip_dim % 128 == 0:
        tokens_per_step = 1
        max_k = clip_dim // 128          # tk must stay a 128-lane multiple
        k_steps = 1
        for k in range(min(max_k, max_k_steps), 0, -1):
            if max_k % k == 0 and per_token // k >= target_bytes:
                k_steps = k
                break
    else:
        k_steps = 1
        want = max(1, target_bytes // per_token)
        tokens_per_step = int(max(1, min(num_tokens, want, max_tokens_per_step)))
        while num_tokens % tokens_per_step:
            tokens_per_step -= 1
    return tokens_per_step, k_steps


def make_image_proj_kernel(batch, clip_dim, cross_dim, num_tokens,
                           eps=1e-5, out_dtype=jnp.bfloat16):
    """Builds forward(image_embeds, wt, b, gamma, beta) -> (B, T, D).

    Expects already-prepared parameters (see prepare_params):
      wt    : (num_tokens, clip_dim, cross_dim)  bf16 (token-major, contiguous)
      b     : (1, num_tokens * cross_dim)        f32
      gamma : (1, cross_dim)                     f32
      beta  : (1, cross_dim)                     f32
    """
    assert cross_dim % 128 == 0, "cross_attention_dim must be a multiple of 128"
    out_features = num_tokens * cross_dim

    tokens_per_step, k_steps = _choose_tiling(clip_dim, cross_dim, num_tokens)
    num_groups = num_tokens // tokens_per_step
    tk = clip_dim // k_steps
    n = tokens_per_step
    D = cross_dim

    def kernel(x_ref, w_ref, b_ref, g_ref, beta_ref, o_ref, acc_ref):
        k = pl.program_id(1)

        @pl.when(k == 0)
        def _():
            acc_ref[...] = jnp.zeros_like(acc_ref)

        # ---- projection: one MXU dot per token in this group (static unroll),
        #      accumulating the clip_dim (k) slices in f32 VMEM scratch ----
        x = x_ref[...]                                        # (B, tk) bf16
        for i in range(n):
            acc_ref[:, i * D:(i + 1) * D] += jnp.dot(
                x, w_ref[i], preferred_element_type=jnp.float32)

        # ---- last reduction step: bias + fused two-pass LayerNorm + store ----
        @pl.when(k == k_steps - 1)
        def _():
            y = acc_ref[...] + b_ref[...]                     # (B, n*D) f32
            gamma = g_ref[...]                                # (1, D)
            beta = beta_ref[...]                              # (1, D)
            for i in range(n):
                seg = y[:, i * D:(i + 1) * D]
                mean = jnp.mean(seg, axis=-1, keepdims=True)
                c = seg - mean
                var = jnp.mean(c * c, axis=-1, keepdims=True)
                yn = c * lax.rsqrt(var + eps)
                o_ref[:, i * D:(i + 1) * D] = (yn * gamma + beta).astype(o_ref.dtype)

    grid_spec = pltpu.PrefetchScalarGridSpec(
        num_scalar_prefetch=0,
        grid=(num_groups, k_steps),
        in_specs=[
            # activations: tiny; only re-DMAed when the k-block changes
            pl.BlockSpec((batch, tk), lambda g, k: (0, k)),
            # weight: contiguous (n, tk, D) slab from the token-major layout,
            # double-buffered by the pipeline (weight stream ~= all bytes)
            pl.BlockSpec((n, tk, D), lambda g, k: (g, k, 0)),
            # bias: matching (1, n*D) slice of the (1, T*D) row
            pl.BlockSpec((1, n * D), lambda g, k: (0, g)),
            # LayerNorm affine: same (1, D) block every step
            pl.BlockSpec((1, D), lambda g, k: (0, 0)),
            pl.BlockSpec((1, D), lambda g, k: (0, 0)),
        ],
        # lane-dense (B, n*D) output block per token group into a (B, T*D) slab
        out_specs=pl.BlockSpec((batch, n * D), lambda g, k: (0, g)),
        scratch_shapes=[pltpu.VMEM((batch, n * D), jnp.float32)],
    )

    weight_bytes = num_tokens * clip_dim * cross_dim * 2
    cost = pl.CostEstimate(
        flops=2 * batch * clip_dim * out_features,
        transcendentals=batch * num_tokens,
        bytes_accessed=(weight_bytes
                        + batch * clip_dim * 2
                        + batch * out_features * jnp.dtype(out_dtype).itemsize
                        + out_features * 4
                        + 2 * cross_dim * 4),
    )

    call = pl.pallas_call(
        kernel,
        out_shape=jax.ShapeDtypeStruct((batch, out_features), out_dtype),
        grid_spec=grid_spec,
        compiler_params=pltpu.CompilerParams(
            # token-group axis is independent -> shard across TCs on v7x;
            # clip reduction axis carries the accumulator -> arbitrary
            dimension_semantics=("parallel", "arbitrary"),
            # working set (2x ~1-2.5 MiB weight buffers + small scratch) is
            # well under the 32 MiB scoped default on v5e/v6e/v7x
            vmem_limit_bytes=32 * 1024 * 1024,
        ),
        cost_estimate=cost,
    )

    def forward(image_embeds, wt, b, gamma, beta):
        # match torch: embeds = image_embeds.to(proj.weight.dtype)
        x = image_embeds.astype(wt.dtype)
        out_flat = call(x, wt, b, gamma, beta)                # (B, T*D) bf16
        # contiguous (B, T*D) -> (B, T, D): metadata-only
        return out_flat.reshape(batch, num_tokens, cross_dim)

    return forward


def init_params(key, clip_dim, cross_dim, num_tokens, dtype=jnp.float32):
    """Parameters in PyTorch layout (nn.Linear weight is (out, in))."""
    out_features = num_tokens * cross_dim
    kw, kb = jax.random.split(key)
    bound = 1.0 / math.sqrt(clip_dim)
    w = jax.random.uniform(kw, (out_features, clip_dim), dtype, -bound, bound)
    b = jax.random.uniform(kb, (out_features,), dtype, -bound, bound)
    gamma = jnp.ones((cross_dim,), dtype)
    beta = jnp.zeros((cross_dim,), dtype)
    return w, b, gamma, beta


def prepare_params(w, b, gamma, beta, num_tokens, cross_dim,
                   compute_dtype=jnp.bfloat16):
    """ONE-TIME parameter prep (not per forward call):
       - re-layout the Linear weight (out,in) -> token-major (T, clip, D) so
         each per-token slab is contiguous in HBM (single large DMA burst),
       - cast the weight to bf16 (halves HBM traffic; MXU accumulates in f32),
       - keep bias / LayerNorm affine in f32 (tiny, applied post-accumulation)."""
    out_features, clip_dim = w.shape
    assert out_features == num_tokens * cross_dim
    wt = jnp.asarray(
        w.reshape(num_tokens, cross_dim, clip_dim).transpose(0, 2, 1),
        compute_dtype)                                        # (T, clip, D)
    return (wt,
            jnp.asarray(b, jnp.float32).reshape(1, -1),
            jnp.asarray(gamma, jnp.float32).reshape(1, -1),
            jnp.asarray(beta, jnp.float32).reshape(1, -1))


if __name__ == "__main__":
    # small, TPU-friendly shapes consistent with the module
    batch = 2
    clip_embeddings_dim = 128
    cross_attention_dim = 128
    clip_extra_context_tokens = 4
    eps = 1e-5

    key = jax.random.PRNGKey(0)
    k_x, k_p = jax.random.split(key)

    image_embeds = jax.random.normal(
        k_x, (batch, clip_embeddings_dim), jnp.float32)
    w, b, gamma, beta = init_params(
        k_p, clip_embeddings_dim, cross_attention_dim, clip_extra_context_tokens)
    wt, b2, g2, bt2 = prepare_params(
        w, b, gamma, beta, clip_extra_context_tokens, cross_attention_dim)

    fwd = jax.jit(make_image_proj_kernel(
        batch, clip_embeddings_dim, cross_attention_dim,
        clip_extra_context_tokens, eps))

    out = jax.block_until_ready(fwd(image_embeds, wt, b2, g2, bt2))

    # reference in plain JAX with the same bf16-rounded activation/weight
    x_f = image_embeds.astype(jnp.bfloat16).astype(jnp.float32)
    w_f = w.astype(jnp.bfloat16).astype(jnp.float32)
    y_ref = (x_f @ w_f.T + b).reshape(
        batch, clip_extra_context_tokens, cross_attention_dim)
    mean = y_ref.mean(-1, keepdims=True)
    var = ((y_ref - mean) ** 2).mean(-1, keepdims=True)
    y_ref = (y_ref - mean) / jnp.sqrt(var + eps) * gamma + beta

    assert out.shape == (batch, clip_extra_context_tokens, cross_attention_dim)
    out_f32 = out.astype(jnp.float32)
    max_err = float(jnp.max(jnp.abs(out_f32 - y_ref)))
    assert jnp.allclose(out_f32, y_ref, atol=5e-2, rtol=5e-2), (
        "max abs err = %g" % max_err)
    print("KERNEL_OK")
</pallas_src>

<mosaic_0001>
module attributes {stable_mosaic.version = 11 : i64} {
  func.func @kernel(%arg0: i32, %arg1: i32, %arg2: memref<2x128xbf16, #tpu.memory_space<vmem>>, %arg3: memref<4x128x128xbf16, #tpu.memory_space<vmem>>, %arg4: memref<1x512xf32, #tpu.memory_space<vmem>>, %arg5: memref<1x128xf32, #tpu.memory_space<vmem>>, %arg6: memref<1x128xf32, #tpu.memory_space<vmem>>, %arg7: memref<2x512xbf16, #tpu.memory_space<vmem>>, %arg8: memref<2x512xf32, #tpu.memory_space<vmem>>) attributes {dimension_semantics = [#tpu.dimension_semantics<parallel>, #tpu.dimension_semantics<arbitrary>], iteration_bounds = array<i64: 1, 1>, scalar_prefetch = 0 : i64, scratch_operands = 1 : i64, tpu.core_type = #tpu.core_type<tc>, window_params = [{transform_indices = @transform_0, window_bounds = array<i64: 2, 128>}, {transform_indices = @transform_1, window_bounds = array<i64: 4, 128, 128>}, {transform_indices = @transform_2, window_bounds = array<i64: 1, 512>}, {pipeline_mode = #tpu.pipeline_mode<synchronous>, transform_indices = @transform_3, window_bounds = array<i64: 1, 128>}, {pipeline_mode = #tpu.pipeline_mode<synchronous>, transform_indices = @transform_4, window_bounds = array<i64: 1, 128>}, {transform_indices = @transform_5, window_bounds = array<i64: 2, 512>}]} {
    %c0_i32 = arith.constant 0 : i32
    %0 = arith.cmpi eq, %arg1, %c0_i32 : i32
    %1 = arith.extui %0 : i1 to i32
    %c0_i32_0 = arith.constant 0 : i32
    %2 = arith.cmpi ne, %1, %c0_i32_0 : i32
    scf.if %2 {
      %cst_29 = arith.constant 0.000000e+00 : f32
      %31 = vector.broadcast %cst_29 : f32 to vector<2x512xf32>
      %c0_30 = arith.constant 0 : index
      %c0_31 = arith.constant 0 : index
      %32 = vector.load %arg8[%c0_30, %c0_31] : memref<2x512xf32, #tpu.memory_space<vmem>>, vector<2x512xf32>
      tpu.vector_store %arg8[%c0_30, %c0_31], %31 {strides = array<i32>} : memref<2x512xf32, #tpu.memory_space<vmem>>, vector<2x512xf32>,
    } else {
    }
    %c0 = arith.constant 0 : index
    %c0_1 = arith.constant 0 : index
    %3 = vector.load %arg2[%c0, %c0_1] : memref<2x128xbf16, #tpu.memory_space<vmem>>, vector<2x128xbf16>
    %c0_2 = arith.constant 0 : index
    %c0_3 = arith.constant 0 : index
    %4 = vector.load %arg8[%c0_2, %c0_3] : memref<2x512xf32, #tpu.memory_space<vmem>>, vector<2x128xf32>
    %c0_4 = arith.constant 0 : index
    %c0_5 = arith.constant 0 : index
    %c0_6 = arith.constant 0 : index
    %5 = vector.load %arg3[%c0_4, %c0_5, %c0_6] : memref<4x128x128xbf16, #tpu.memory_space<vmem>>, vector<1x128x128xbf16>
    %6 = vector.shape_cast %5 : vector<1x128x128xbf16> to vector<128x128xbf16>
    %cst = arith.constant dense<0.000000e+00> : vector<2x128xf32>
    %7 = tpu.matmul %3, %6, %cst {dimension_numbers = #tpu.dot_dimension_numbers<[1], [0], [0], [1], [0, 0, 1, 1], [], []>} : vector<2x128xbf16>, vector<128x128xbf16>, vector<2x128xf32> -> vector<2x128xf32>
    %8 = arith.addf %4, %7 : vector<2x128xf32>
    %c0_7 = arith.constant 0 : index
    %c0_8 = arith.constant 0 : index
    %9 = vector.load %arg8[%c0_7, %c0_8] : memref<2x512xf32, #tpu.memory_space<vmem>>, vector<2x128xf32>
    tpu.vector_store %arg8[%c0_7, %c0_8], %8 {strides = array<i32>} : memref<2x512xf32, #tpu.memory_space<vmem>>, vector<2x128xf32>,
    %c0_9 = arith.constant 0 : index
    %c128 = arith.constant 128 : index
    %10 = vector.load %arg8[%c0_9, %c128] : memref<2x512xf32, #tpu.memory_space<vmem>>, vector<2x128xf32>
    %c1 = arith.constant 1 : index
    %c0_10 = arith.constant 0 : index
    %c0_11 = arith.constant 0 : index
    %11 = vector.load %arg3[%c1, %c0_10, %c0_11] : memref<4x128x128xbf16, #tpu.memory_space<vmem>>, vector<1x128x128xbf16>
    %12 = vector.shape_cast %11 : vector<1x128x128xbf16> to vector<128x128xbf16>
    %cst_12 = arith.constant dense<0.000000e+00> : vector<2x128xf32>
    %13 = tpu.matmul %3, %12, %cst_12 {dimension_numbers = #tpu.dot_dimension_numbers<[1], [0], [0], [1], [0, 0, 1, 1], [], []>} : vector<2x128xbf16>, vector<128x128xbf16>, vector<2x128xf32> -> vector<2x128xf32>
    %14 = arith.addf %10, %13 : vector<2x128xf32>
    %c0_13 = arith.constant 0 : index
    %c128_14 = arith.constant 128 : index
    %15 = vector.load %arg8[%c0_13, %c128_14] : memref<2x512xf32, #tpu.memory_space<vmem>>, vector<2x128xf32>
    tpu.vector_store %arg8[%c0_13, %c128_14], %14 {strides = array<i32>} : memref<2x512xf32, #tpu.memory_space<vmem>>, vector<2x128xf32>,
    %c0_15 = arith.constant 0 : index
    %c256 = arith.constant 256 : index
    %16 = vector.load %arg8[%c0_15, %c256] : memref<2x512xf32, #tpu.memory_space<vmem>>, vector<2x128xf32>
    %c2 = arith.constant 2 : index
    %c0_16 = arith.constant 0 : index
    %c0_17 = arith.constant 0 : index
    %17 = vector.load %arg3[%c2, %c0_16, %c0_17] : memref<4x128x128xbf16, #tpu.memory_space<vmem>>, vector<1x128x128xbf16>
    %18 = vector.shape_cast %17 : vector<1x128x128xbf16> to vector<128x128xbf16>
    %cst_18 = arith.constant dense<0.000000e+00> : vector<2x128xf32>
    %19 = tpu.matmul %3, %18, %cst_18 {dimension_numbers = #tpu.dot_dimension_numbers<[1], [0], [0], [1], [0, 0, 1, 1], [], []>} : vector<2x128xbf16>, vector<128x128xbf16>, vector<2x128xf32> -> vector<2x128xf32>
    %20 = arith.addf %16, %19 : vector<2x128xf32>
    %c0_19 = arith.constant 0 : index
    %c256_20 = arith.constant 256 : index
    %21 = vector.load %arg8[%c0_19, %c256_20] : memref<2x512xf32, #tpu.memory_space<vmem>>, vector<2x128xf32>
    tpu.vector_store %arg8[%c0_19, %c256_20], %20 {strides = array<i32>} : memref<2x512xf32, #tpu.memory_space<vmem>>, vector<2x128xf32>,
    %c0_21 = arith.constant 0 : index
    %c384 = arith.constant 384 : index
    %22 = vector.load %arg8[%c0_21, %c384] : memref<2x512xf32, #tpu.memory_space<vmem>>, vector<2x128xf32>
    %c3 = arith.constant 3 : index
    %c0_22 = arith.constant 0 : index
    %c0_23 = arith.constant 0 : index
    %23 = vector.load %arg3[%c3, %c0_22, %c0_23] : memref<4x128x128xbf16, #tpu.memory_space<vmem>>, vector<1x128x128xbf16>
    %24 = vector.shape_cast %23 : vector<1x128x128xbf16> to vector<128x128xbf16>
    %cst_24 = arith.constant dense<0.000000e+00> : vector<2x128xf32>
    %25 = tpu.matmul %3, %24, %cst_24 {dimension_numbers = #tpu.dot_dimension_numbers<[1], [0], [0], [1], [0, 0, 1, 1], [], []>} : vector<2x128xbf16>, vector<128x128xbf16>, vector<2x128xf32> -> vector<2x128xf32>
    %26 = arith.addf %22, %25 : vector<2x128xf32>
    %c0_25 = arith.constant 0 : index
    %c384_26 = arith.constant 384 : index
    %27 = vector.load %arg8[%c0_25, %c384_26] : memref<2x512xf32, #tpu.memory_space<vmem>>, vector<2x128xf32>
    tpu.vector_store %arg8[%c0_25, %c384_26], %26 {strides = array<i32>} : memref<2x512xf32, #tpu.memory_space<vmem>>, vector<2x128xf32>,
    %c0_i32_27 = arith.constant 0 : i32
    %28 = arith.cmpi eq, %arg1, %c0_i32_27 : i32
    %29 = arith.extui %28 : i1 to i32
    %c0_i32_28 = arith.constant 0 : i32
    %30 = arith.cmpi ne, %29, %c0_i32_28 : i32
    scf.if %30 {
      %c0_29 = arith.constant 0 : index
      %c0_30 = arith.constant 0 : index
      %31 = vector.load %arg8[%c0_29, %c0_30] : memref<2x512xf32, #tpu.memory_space<vmem>>, vector<2x512xf32>
      %c0_31 = arith.constant 0 : index
      %c0_32 = arith.constant 0 : index
      %32 = vector.load %arg4[%c0_31, %c0_32] : memref<1x512xf32, #tpu.memory_space<vmem>>, vector<1x512xf32>
      %33 = vector.broadcast %32 : vector<1x512xf32> to vector<2x512xf32>
      %34 = arith.addf %31, %33 : vector<2x512xf32>
      %c0_33 = arith.constant 0 : index
      %c0_34 = arith.constant 0 : index
      %35 = vector.load %arg5[%c0_33, %c0_34] : memref<1x128xf32, #tpu.memory_space<vmem>>, vector<1x128xf32>
      %c0_35 = arith.constant 0 : index
      %c0_36 = arith.constant 0 : index
      %36 = vector.load %arg6[%c0_35, %c0_36] : memref<1x128xf32, #tpu.memory_space<vmem>>, vector<1x128xf32>
      %37 = vector.extract_strided_slice %34 {offsets = [0, 0], sizes = [2, 128], strides = [1, 1]} : vector<2x512xf32> to vector<2x128xf32>
      %cst_37 = arith.constant dense<0.000000e+00> : vector<2xf32>
      %38 = vector.multi_reduction <add>, %37, %cst_37 [1] : vector<2x128xf32> to vector<2xf32>
      %39 = vector.shape_cast %38 : vector<2xf32> to vector<2x1xf32>
      %cst_38 = arith.constant 1.280000e+02 : f32
      %40 = vector.broadcast %cst_38 : f32 to vector<2x1xf32>
      %41 = arith.divf %39, %40 : vector<2x1xf32>
      %42 = vector.broadcast %41 : vector<2x1xf32> to vector<2x128xf32>
      %43 = arith.subf %37, %42 : vector<2x128xf32>
      %44 = arith.mulf %43, %43 : vector<2x128xf32>
      %cst_39 = arith.constant dense<0.000000e+00> : vector<2xf32>
      %45 = vector.multi_reduction <add>, %44, %cst_39 [1] : vector<2x128xf32> to vector<2xf32>
      %46 = vector.shape_cast %45 : vector<2xf32> to vector<2x1xf32>
      %cst_40 = arith.constant 1.280000e+02 : f32
      %47 = vector.broadcast %cst_40 : f32 to vector<2x1xf32>
      %48 = arith.divf %46, %47 : vector<2x1xf32>
      %cst_41 = arith.constant 9.99999974E-6 : f32
      %49 = vector.broadcast %cst_41 : f32 to vector<2x1xf32>
      %50 = arith.addf %48, %49 : vector<2x1xf32>
      %51 = math.rsqrt %50 : vector<2x1xf32>
      %52 = vector.broadcast %51 : vector<2x1xf32> to vector<2x128xf32>
      %53 = arith.mulf %43, %52 : vector<2x128xf32>
      %54 = vector.broadcast %35 : vector<1x128xf32> to vector<2x128xf32>
      %55 = arith.mulf %53, %54 : vector<2x128xf32>
      %56 = vector.broadcast %36 : vector<1x128xf32> to vector<2x128xf32>
      %57 = arith.addf %55, %56 : vector<2x128xf32>
      %58 = arith.truncf %57 : vector<2x128xf32> to vector<2x128xbf16>
      %c0_42 = arith.constant 0 : index
      %c0_43 = arith.constant 0 : index
      %59 = vector.load %arg7[%c0_42, %c0_43] : memref<2x512xbf16, #tpu.memory_space<vmem>>, vector<2x128xbf16>
      tpu.vector_store %arg7[%c0_42, %c0_43], %58 {strides = array<i32>} : memref<2x512xbf16, #tpu.memory_space<vmem>>, vector<2x128xbf16>,
      %60 = vector.extract_strided_slice %34 {offsets = [0, 128], sizes = [2, 128], strides = [1, 1]} : vector<2x512xf32> to vector<2x128xf32>
      %cst_44 = arith.constant dense<0.000000e+00> : vector<2xf32>
      %61 = vector.multi_reduction <add>, %60, %cst_44 [1] : vector<2x128xf32> to vector<2xf32>
      %62 = vector.shape_cast %61 : vector<2xf32> to vector<2x1xf32>
      %cst_45 = arith.constant 1.280000e+02 : f32
      %63 = vector.broadcast %cst_45 : f32 to vector<2x1xf32>
      %64 = arith.divf %62, %63 : vector<2x1xf32>
      %65 = vector.broadcast %64 : vector<2x1xf32> to vector<2x128xf32>
      %66 = arith.subf %60, %65 : vector<2x128xf32>
      %67 = arith.mulf %66, %66 : vector<2x128xf32>
      %cst_46 = arith.constant dense<0.000000e+00> : vector<2xf32>
      %68 = vector.multi_reduction <add>, %67, %cst_46 [1] : vector<2x128xf32> to vector<2xf32>
      %69 = vector.shape_cast %68 : vector<2xf32> to vector<2x1xf32>
      %cst_47 = arith.constant 1.280000e+02 : f32
      %70 = vector.broadcast %cst_47 : f32 to vector<2x1xf32>
      %71 = arith.divf %69, %70 : vector<2x1xf32>
      %cst_48 = arith.constant 9.99999974E-6 : f32
      %72 = vector.broadcast %cst_48 : f32 to vector<2x1xf32>
      %73 = arith.addf %71, %72 : vector<2x1xf32>
      %74 = math.rsqrt %73 : vector<2x1xf32>
      %75 = vector.broadcast %74 : vector<2x1xf32> to vector<2x128xf32>
      %76 = arith.mulf %66, %75 : vector<2x128xf32>
      %77 = vector.broadcast %35 : vector<1x128xf32> to vector<2x128xf32>
      %78 = arith.mulf %76, %77 : vector<2x128xf32>
      %79 = vector.broadcast %36 : vector<1x128xf32> to vector<2x128xf32>
      %80 = arith.addf %78, %79 : vector<2x128xf32>
      %81 = arith.truncf %80 : vector<2x128xf32> to vector<2x128xbf16>
      %c0_49 = arith.constant 0 : index
      %c128_50 = arith.constant 128 : index
      %82 = vector.load %arg7[%c0_49, %c128_50] : memref<2x512xbf16, #tpu.memory_space<vmem>>, vector<2x128xbf16>
      tpu.vector_store %arg7[%c0_49, %c128_50], %81 {strides = array<i32>} : memref<2x512xbf16, #tpu.memory_space<vmem>>, vector<2x128xbf16>,
      %83 = vector.extract_strided_slice %34 {offsets = [0, 256], sizes = [2, 128], strides = [1, 1]} : vector<2x512xf32> to vector<2x128xf32>
      %cst_51 = arith.constant dense<0.000000e+00> : vector<2xf32>
      %84 = vector.multi_reduction <add>, %83, %cst_51 [1] : vector<2x128xf32> to vector<2xf32>
      %85 = vector.shape_cast %84 : vector<2xf32> to vector<2x1xf32>
      %cst_52 = arith.constant 1.280000e+02 : f32
      %86 = vector.broadcast %cst_52 : f32 to vector<2x1xf32>
      %87 = arith.divf %85, %86 : vector<2x1xf32>
      %88 = vector.broadcast %87 : vector<2x1xf32> to vector<2x128xf32>
      %89 = arith.subf %83, %88 : vector<2x128xf32>
      %90 = arith.mulf %89, %89 : vector<2x128xf32>
      %cst_53 = arith.constant dense<0.000000e+00> : vector<2xf32>
      %91 = vector.multi_reduction <add>, %90, %cst_53 [1] : vector<2x128xf32> to vector<2xf32>
      %92 = vector.shape_cast %91 : vector<2xf32> to vector<2x1xf32>
      %cst_54 = arith.constant 1.280000e+02 : f32
      %93 = vector.broadcast %cst_54 : f32 to vector<2x1xf32>
      %94 = arith.divf %92, %93 : vector<2x1xf32>
      %cst_55 = arith.constant 9.99999974E-6 : f32
      %95 = vector.broadcast %cst_55 : f32 to vector<2x1xf32>
      %96 = arith.addf %94, %95 : vector<2x1xf32>
      %97 = math.rsqrt %96 : vector<2x1xf32>
      %98 = vector.broadcast %97 : vector<2x1xf32> to vector<2x128xf32>
      %99 = arith.mulf %89, %98 : vector<2x128xf32>
      %100 = vector.broadcast %35 : vector<1x128xf32> to vector<2x128xf32>
      %101 = arith.mulf %99, %100 : vector<2x128xf32>
      %102 = vector.broadcast %36 : vector<1x128xf32> to vector<2x128xf32>
      %103 = arith.addf %101, %102 : vector<2x128xf32>
      %104 = arith.truncf %103 : vector<2x128xf32> to vector<2x128xbf16>
      %c0_56 = arith.constant 0 : index
      %c256_57 = arith.constant 256 : index
      %105 = vector.load %arg7[%c0_56, %c256_57] : memref<2x512xbf16, #tpu.memory_space<vmem>>, vector<2x128xbf16>
      tpu.vector_store %arg7[%c0_56, %c256_57], %104 {strides = array<i32>} : memref<2x512xbf16, #tpu.memory_space<vmem>>, vector<2x128xbf16>,
      %106 = vector.extract_strided_slice %34 {offsets = [0, 384], sizes = [2, 128], strides = [1, 1]} : vector<2x512xf32> to vector<2x128xf32>
      %cst_58 = arith.constant dense<0.000000e+00> : vector<2xf32>
      %107 = vector.multi_reduction <add>, %106, %cst_58 [1] : vector<2x128xf32> to vector<2xf32>
      %108 = vector.shape_cast %107 : vector<2xf32> to vector<2x1xf32>
      %cst_59 = arith.constant 1.280000e+02 : f32
      %109 = vector.broadcast %cst_59 : f32 to vector<2x1xf32>
      %110 = arith.divf %108, %109 : vector<2x1xf32>
      %111 = vector.broadcast %110 : vector<2x1xf32> to vector<2x128xf32>
      %112 = arith.subf %106, %111 : vector<2x128xf32>
      %113 = arith.mulf %112, %112 : vector<2x128xf32>
      %cst_60 = arith.constant dense<0.000000e+00> : vector<2xf32>
      %114 = vector.multi_reduction <add>, %113, %cst_60 [1] : vector<2x128xf32> to vector<2xf32>
      %115 = vector.shape_cast %114 : vector<2xf32> to vector<2x1xf32>
      %cst_61 = arith.constant 1.280000e+02 : f32
      %116 = vector.broadcast %cst_61 : f32 to vector<2x1xf32>
      %117 = arith.divf %115, %116 : vector<2x1xf32>
      %cst_62 = arith.constant 9.99999974E-6 : f32
      %118 = vector.broadcast %cst_62 : f32 to vector<2x1xf32>
      %119 = arith.addf %117, %118 : vector<2x1xf32>
      %120 = math.rsqrt %119 : vector<2x1xf32>
      %121 = vector.broadcast %120 : vector<2x1xf32> to vector<2x128xf32>
      %122 = arith.mulf %112, %121 : vector<2x128xf32>
      %123 = vector.broadcast %35 : vector<1x128xf32> to vector<2x128xf32>
      %124 = arith.mulf %122, %123 : vector<2x128xf32>
      %125 = vector.broadcast %36 : vector<1x128xf32> to vector<2x128xf32>
      %126 = arith.addf %124, %125 : vector<2x128xf32>
      %127 = arith.truncf %126 : vector<2x128xf32> to vector<2x128xbf16>
      %c0_63 = arith.constant 0 : index
      %c384_64 = arith.constant 384 : index
      %128 = vector.load %arg7[%c0_63, %c384_64] : memref<2x512xbf16, #tpu.memory_space<vmem>>, vector<2x128xbf16>
      tpu.vector_store %arg7[%c0_63, %c384_64], %127 {strides = array<i32>} : memref<2x512xbf16, #tpu.memory_space<vmem>>, vector<2x128xbf16>,
    } else {
    }
    return
  }
  func.func @transform_0(%arg0: i32, %arg1: i32) -> (i32, i32) {
    %c0_i32 = arith.constant 0 : i32
    %c0_i32_0 = arith.constant 0 : i32
    return %c0_i32, %arg1 : i32, i32
  }
  func.func @transform_1(%arg0: i32, %arg1: i32) -> (i32, i32, i32) {
    %c0_i32 = arith.constant 0 : i32
    %c0_i32_0 = arith.constant 0 : i32
    return %arg0, %arg1, %c0_i32 : i32, i32, i32
  }
  func.func @transform_2(%arg0: i32, %arg1: i32) -> (i32, i32) {
    %c0_i32 = arith.constant 0 : i32
    %c0_i32_0 = arith.constant 0 : i32
    return %c0_i32, %arg0 : i32, i32
  }
  func.func @transform_3(%arg0: i32, %arg1: i32) -> (i32, i32) {
    %c0_i32 = arith.constant 0 : i32
    %c0_i32_0 = arith.constant 0 : i32
    %c0_i32_1 = arith.constant 0 : i32
    return %c0_i32, %c0_i32_0 : i32, i32
  }
  func.func @transform_4(%arg0: i32, %arg1: i32) -> (i32, i32) {
    %c0_i32 = arith.constant 0 : i32
    %c0_i32_0 = arith.constant 0 : i32
    %c0_i32_1 = arith.constant 0 : i32
    return %c0_i32, %c0_i32_0 : i32, i32
  }
  func.func @transform_5(%arg0: i32, %arg1: i32) -> (i32, i32) {
    %c0_i32 = arith.constant 0 : i32
    %c0_i32_0 = arith.constant 0 : i32
    return %c0_i32, %arg0 : i32, i32
  }
}

</mosaic_0001>

<llo_original>
// kernel: forward.1
$region0: #{forward.1}
  #allocation0 [shape = 'u32[]', space=smem, size = 0x4, offset = 0x4, fixed_abs, tag = 'smem constant byte address 0x4 - core index']
  #allocation1 [shape = 'u32[144,128]{1,0:T(1,128)}', space=vmem, size = 0x12000, scoped, tag = 'internal scratch']
  #allocation2 [shape = 'f32[2,512]{1,0:T(2,128)}', space=vmem, size = 0x1000, scoped, tag = 'scratch operand']
  %s0 = inlined_call_operand.vmem [shape: bf16[2,128], index: 0, kind: input, shape index: {}]
  %s1 = inlined_call_operand.hbm [shape: bf16[4,128,128], index: 1, kind: input, shape index: {}]
  %s2 = inlined_call_operand.vmem [shape: f32[1,512], index: 2, kind: input, shape index: {}]
  %s3 = inlined_call_operand.vmem [shape: f32[1,128], index: 3, kind: input, shape index: {}]
  %s4 = inlined_call_operand.vmem [shape: f32[1,128], index: 4, kind: input, shape index: {}]
  %s5 = inlined_call_operand.vmem [shape: bf16[2,512], index: 5, kind: output, shape index: {}]
  %s6 = sld [smem:[#allocation0]]
  $region42: #{forward.1} parent=0
    _
  %s8 = ssub.s32 1, %s6
  %s9 = scalar_select 0, %s8, %s6
  $region1: #{forward.1} parent=0
    #allocation3 [shape = 'u8[131072]{0}', space=vmem, size = 0x20000, scoped, tag = 'input window, operand 1, single buffered']
    #allocation4 [shape = 's32[1]{0}', space=sflag, size = 0x4, scoped, tag = 'scoped memory for forward.1']
    %10 = vsyncpa [#allocation4], 0
    // Predicated region
    $region2: #{forward.1} parent=1 // pred_check
      _
    $region3: #{forward.1} parent=1 // pred_check_branch
      %12 = sbr.rel (0) target = $region5
    $region4: #{forward.1} parent=1 // pred_region
      _
    $region5: #{forward.1} parent=1 // pred_fallthru
      _
    // Predicated region
    $region6: #{forward.1} parent=1 // pred_check
      _
    $region7: #{forward.1} parent=1 // pred_check_branch
      %14 = sbr.rel (0) target = $region9
    $region8: #{forward.1} parent=1 // pred_region
      %s16 = ssub.s32 4096, 4096
      %17 = vsyncadd [#allocation4], %s16
      %s18 = sshll.u32 [#allocation3], 4
      %s19 = int_to_ptr.vmem [resolvable:$true] %s18
      %24 = dma.hbm_to_vmem [thread:$0]  %s1, 4096, %s19, [#allocation4], 64, 64, 4
    $region9: #{forward.1} parent=1 // pred_fallthru
      _
    // Predicated region
    $region10: #{forward.1} parent=1 // pred_check
      _
    $region11: #{forward.1} parent=1 // pred_check_branch
      %26 = sbr.rel (0) target = $region13
    $region12: #{forward.1} parent=1 // pred_region
      _
    $region13: #{forward.1} parent=1 // pred_fallthru
      _
    // Predicated region
    $region14: #{forward.1} parent=1 // pred_check
      _
    $region15: #{forward.1} parent=1 // pred_check_branch
      %28 = sbr.rel (0) target = $region17
    $region16: #{forward.1} parent=1 // pred_region
      _
    $region17: #{forward.1} parent=1 // pred_fallthru
      _
    // Predicated region
    $region18: #{forward.1} parent=1 // pred_check
      _
    $region19: #{forward.1} parent=1 // pred_check_branch
      %30 = sbr.rel (0) target = $region21
    $region20: #{forward.1} parent=1 // pred_region
      _
    $region21: #{forward.1} parent=1 // pred_fallthru
      _
    // Predicated region
    $region22: #{forward.1} parent=1 // pred_check
      _
    $region23: #{forward.1} parent=1 // pred_check_branch
      %32 = sbr.rel (0) target = $region25
    $region24: #{forward.1} parent=1 // pred_region
      %33 = dma.done [#allocation4], 4096
    $region25: #{forward.1} parent=1 // pred_fallthru
      _
    %p35 = scmp.eq.s32.totalorder 0, 0
    // Predicated region
    $region26: #{forward.1} parent=1 // pred_check
      %p36 = pneg %p35
    $region27: #{forward.1} parent=1 // pred_check_branch
      %38 = sbr.rel (%p36) target = $region29
    $region28: #{forward.1} parent=1 // pred_region
      %39 = vst [vmem:[#allocation2] sm:$0xff] 0.0
    $region29: #{forward.1} parent=1 // pred_fallthru
      _
    %v40 = vld [vmem:[%s0] sm:$0x1]
    %v41 = vld [vmem:[#allocation2] sm:$0x3]
    %v42 = vld [vmem:[#allocation3] sm:$0xf]
    %v43 = vld [vmem:[#allocation3 + $0x4] sm:$0xf]
    %v44 = vld [vmem:[#allocation3 + $0x8] sm:$0xf]
    %v45 = vld [vmem:[#allocation3 + $0xc] sm:$0xf]
    %v46 = vld [vmem:[#allocation3 + $0x10] sm:$0xf]
    %v47 = vld [vmem:[#allocation3 + $0x14] sm:$0xf]
    %v48 = vld [vmem:[#allocation3 + $0x18] sm:$0xf]
    %v49 = vld [vmem:[#allocation3 + $0x1c] sm:$0xf]
    %v50 = vld [vmem:[#allocation3 + $0x20] sm:$0xf]
    %v51 = vld [vmem:[#allocation3 + $0x24] sm:$0xf]
    %v52 = vld [vmem:[#allocation3 + $0x28] sm:$0xf]
    %v53 = vld [vmem:[#allocation3 + $0x2c] sm:$0xf]
    %v54 = vld [vmem:[#allocation3 + $0x30] sm:$0xf]
    %v55 = vld [vmem:[#allocation3 + $0x34] sm:$0xf]
    %v56 = vld [vmem:[#allocation3 + $0x38] sm:$0xf]
    %v57 = vld [vmem:[#allocation3 + $0x3c] sm:$0xf]
    %v74 = vunpack.c.l.b16 %v42
    %v75 = vunpack.c.l.b16 %v43
    %v76 = vunpack.c.l.b16 %v44
    %v77 = vunpack.c.l.b16 %v45
    %v78 = vunpack.c.l.b16 %v46
    %v79 = vunpack.c.l.b16 %v47
    %v80 = vunpack.c.l.b16 %v48
    %v81 = vunpack.c.l.b16 %v49
    %v82 = vunpack.c.l.b16 %v50
    %v83 = vunpack.c.l.b16 %v51
    %v84 = vunpack.c.l.b16 %v52
    %v85 = vunpack.c.l.b16 %v53
    %v86 = vunpack.c.l.b16 %v54
    %v87 = vunpack.c.l.b16 %v55
    %v88 = vunpack.c.l.b16 %v56
    %v89 = vunpack.c.l.b16 %v57
    %v90 = vpack.c.b16 %v75, %v74
    %v91 = vpack.c.b16 %v77, %v76
    %v92 = vpack.c.b16 %v79, %v78
    %v93 = vpack.c.b16 %v81, %v80
    %v94 = vpack.c.b16 %v83, %v82
    %v95 = vpack.c.b16 %v85, %v84
    %v96 = vpack.c.b16 %v87, %v86
    %v97 = vpack.c.b16 %v89, %v88
    %106 = vmatprep.subr.bf16.mxu0 0
    %107 = vmatpush1.bf16.msra.mxu0 %v97
    %108 = vmatprep.subr.bf16.mxu0 0
    %109 = vmatpush1.bf16.msra.mxu0 %v96
    %110 = vmatprep.subr.bf16.mxu0 0
    %111 = vmatpush1.bf16.msra.mxu0 %v95
    %112 = vmatprep.subr.bf16.mxu0 0
    %113 = vmatpush1.bf16.msra.mxu0 %v94
    %114 = vmatprep.subr.bf16.mxu0 0
    %115 = vmatpush1.bf16.msra.mxu0 %v93
    %116 = vmatprep.subr.bf16.mxu0 0
    %117 = vmatpush1.bf16.msra.mxu0 %v92
    %118 = vmatprep.subr.bf16.mxu0 0
    %119 = vmatpush1.bf16.msra.mxu0 %v91
    %120 = vmatprep.subr.bf16.mxu0 0
    %121 = vmatpush1.bf16.msra.mxu0 %v90
    %122 = vmatprep.subr.bf16.mxu0 0
    %123 = vmatpush2.bf16.msra.mxu0 0
    %124 = vmatprep.subr.bf16.mxu0 0
    %125 = vmatpush2.bf16.msra.mxu0 0
    %126 = vmatprep.subr.bf16.mxu0 0
    %127 = vmatpush2.bf16.msra.mxu0 0
    %128 = vmatprep.subr.bf16.mxu0 0
    %129 = vmatpush2.bf16.msra.mxu0 0
    %130 = vmatprep.subr.bf16.mxu0 0
    %131 = vmatpush2.bf16.msra.mxu0 0
    %132 = vmatprep.subr.bf16.mxu0 0
    %133 = vmatpush2.bf16.msra.mxu0 0
    %134 = vmatprep.subr.bf16.mxu0 0
    %135 = vmatpush2.bf16.msra.mxu0 0
    %136 = vmatprep.subr.bf16.mxu0 0
    %137 = vmatpush2.bf16.msra.mxu0 0
    %138 = vmatprep.mubr.bf16.mxu0 0
    %139 = vmatmul.mubr.bf16.gmra.mxu0 %v40
    %v140 = vpop.f32.mrf.mxu0
    %v141 = vadd.f32 0.0, %v140
    %v142 = vpop.f32.mrf.mxu0
    %v143 = vpop.f32.mrf.mxu0
    %v144 = vpop.f32.mrf.mxu0
    %145 = vdwg.mxu0
    %v146 = vadd.f32 %v41, %v141
    %147 = vst [vmem:[#allocation2] sm:$0x3] %v146
    %v148 = vld [vmem:[#allocation2 + $0x2] sm:$0x3]
    %s149 = scalar_lea.vmem [#allocation3], 64
    %v150 = vld [vmem:[%s149] sm:$0xf]
    %v151 = vld [vmem:[%s149 + $0x4] sm:$0xf]
    %v152 = vld [vmem:[%s149 + $0x8] sm:$0xf]
    %v153 = vld [vmem:[%s149 + $0xc] sm:$0xf]
    %v154 = vld [vmem:[%s149 + $0x10] sm:$0xf]
    %v155 = vld [vmem:[%s149 + $0x14] sm:$0xf]
    %v156 = vld [vmem:[%s149 + $0x18] sm:$0xf]
    %v157 = vld [vmem:[%s149 + $0x1c] sm:$0xf]
    %v158 = vld [vmem:[%s149 + $0x20] sm:$0xf]
    %v159 = vld [vmem:[%s149 + $0x24] sm:$0xf]
    %v160 = vld [vmem:[%s149 + $0x28] sm:$0xf]
    %v161 = vld [vmem:[%s149 + $0x2c] sm:$0xf]
    %v162 = vld [vmem:[%s149 + $0x30] sm:$0xf]
    %v163 = vld [vmem:[%s149 + $0x34] sm:$0xf]
    %v164 = vld [vmem:[%s149 + $0x38] sm:$0xf]
    %v165 = vld [vmem:[%s149 + $0x3c] sm:$0xf]
    %v182 = vunpack.c.l.b16 %v150
    %v183 = vunpack.c.l.b16 %v151
    %v184 = vunpack.c.l.b16 %v152
    %v185 = vunpack.c.l.b16 %v153
    %v186 = vunpack.c.l.b16 %v154
    %v187 = vunpack.c.l.b16 %v155
    %v188 = vunpack.c.l.b16 %v156
    %v189 = vunpack.c.l.b16 %v157
    %v190 = vunpack.c.l.b16 %v158
    %v191 = vunpack.c.l.b16 %v159
    %v192 = vunpack.c.l.b16 %v160
    %v193 = vunpack.c.l.b16 %v161
    %v194 = vunpack.c.l.b16 %v162
    %v195 = vunpack.c.l.b16 %v163
    %v196 = vunpack.c.l.b16 %v164
    %v197 = vunpack.c.l.b16 %v165
    %v198 = vpack.c.b16 %v183, %v182
    %v199 = vpack.c.b16 %v185, %v184
    %v200 = vpack.c.b16 %v187, %v186
    %v201 = vpack.c.b16 %v189, %v188
    %v202 = vpack.c.b16 %v191, %v190
    %v203 = vpack.c.b16 %v193, %v192
    %v204 = vpack.c.b16 %v195, %v194
    %v205 = vpack.c.b16 %v197, %v196
    %214 = vmatprep.subr.bf16.mxu0 0
    %215 = vmatpush1.bf16.msra.mxu0 %v205
    %216 = vmatprep.subr.bf16.mxu0 0
    %217 = vmatpush1.bf16.msra.mxu0 %v204
    %218 = vmatprep.subr.bf16.mxu0 0
    %219 = vmatpush1.bf16.msra.mxu0 %v203
    %220 = vmatprep.subr.bf16.mxu0 0
    %221 = vmatpush1.bf16.msra.mxu0 %v202
    %222 = vmatprep.subr.bf16.mxu0 0
    %223 = vmatpush1.bf16.msra.mxu0 %v201
    %224 = vmatprep.subr.bf16.mxu0 0
    %225 = vmatpush1.bf16.msra.mxu0 %v200
    %226 = vmatprep.subr.bf16.mxu0 0
    %227 = vmatpush1.bf16.msra.mxu0 %v199
    %228 = vmatprep.subr.bf16.mxu0 0
    %229 = vmatpush1.bf16.msra.mxu0 %v198
    %230 = vmatprep.subr.bf16.mxu0 0
    %231 = vmatpush2.bf16.msra.mxu0 0
    %232 = vmatprep.subr.bf16.mxu0 0
    %233 = vmatpush2.bf16.msra.mxu0 0
    %234 = vmatprep.subr.bf16.mxu0 0
    %235 = vmatpush2.bf16.msra.mxu0 0
    %236 = vmatprep.subr.bf16.mxu0 0
    %237 = vmatpush2.bf16.msra.mxu0 0
    %238 = vmatprep.subr.bf16.mxu0 0
    %239 = vmatpush2.bf16.msra.mxu0 0
    %240 = vmatprep.subr.bf16.mxu0 0
    %241 = vmatpush2.bf16.msra.mxu0 0
    %242 = vmatprep.subr.bf16.mxu0 0
    %243 = vmatpush2.bf16.msra.mxu0 0
    %244 = vmatprep.subr.bf16.mxu0 0
    %245 = vmatpush2.bf16.msra.mxu0 0
    %246 = vmatprep.mubr.bf16.mxu0 0
    %247 = vmatmul.mubr.bf16.gmra.mxu0 %v40
    %v248 = vpop.f32.mrf.mxu0
    %v249 = vadd.f32 0.0, %v248
    %v250 = vpop.f32.mrf.mxu0
    %v251 = vpop.f32.mrf.mxu0
    %v252 = vpop.f32.mrf.mxu0
    %253 = vdwg.mxu0
    %v254 = vadd.f32 %v148, %v249
    %255 = vst [vmem:[#allocation2 + $0x2] sm:$0x3] %v254
    %v256 = vld [vmem:[#allocation2 + $0x4] sm:$0x3]
    %s257 = scalar_lea.vmem [#allocation3], 128
    %v258 = vld [vmem:[%s257] sm:$0xf]
    %v259 = vld [vmem:[%s257 + $0x4] sm:$0xf]
    %v260 = vld [vmem:[%s257 + $0x8] sm:$0xf]
    %v261 = vld [vmem:[%s257 + $0xc] sm:$0xf]
    %v262 = vld [vmem:[%s257 + $0x10] sm:$0xf]
    %v263 = vld [vmem:[%s257 + $0x14] sm:$0xf]
    %v264 = vld [vmem:[%s257 + $0x18] sm:$0xf]
    %v265 = vld [vmem:[%s257 + $0x1c] sm:$0xf]
    %v266 = vld [vmem:[%s257 + $0x20] sm:$0xf]
    %v267 = vld [vmem:[%s257 + $0x24] sm:$0xf]
    %v268 = vld [vmem:[%s257 + $0x28] sm:$0xf]
    %v269 = vld [vmem:[%s257 + $0x2c] sm:$0xf]
    %v270 = vld [vmem:[%s257 + $0x30] sm:$0xf]
    %v271 = vld [vmem:[%s257 + $0x34] sm:$0xf]
    %v272 = vld [vmem:[%s257 + $0x38] sm:$0xf]
    %v273 = vld [vmem:[%s257 + $0x3c] sm:$0xf]
    %v290 = vunpack.c.l.b16 %v258
    %v291 = vunpack.c.l.b16 %v259
    %v292 = vunpack.c.l.b16 %v260
    %v293 = vunpack.c.l.b16 %v261
    %v294 = vunpack.c.l.b16 %v262
    %v295 = vunpack.c.l.b16 %v263
    %v296 = vunpack.c.l.b16 %v264
    %v297 = vunpack.c.l.b16 %v265
    %v298 = vunpack.c.l.b16 %v266
    %v299 = vunpack.c.l.b16 %v267
    %v300 = vunpack.c.l.b16 %v268
    %v301 = vunpack.c.l.b16 %v269
    %v302 = vunpack.c.l.b16 %v270
    %v303 = vunpack.c.l.b16 %v271
    %v304 = vunpack.c.l.b16 %v272
    %v305 = vunpack.c.l.b16 %v273
    %v306 = vpack.c.b16 %v291, %v290
    %v307 = vpack.c.b16 %v293, %v292
    %v308 = vpack.c.b16 %v295, %v294
    %v309 = vpack.c.b16 %v297, %v296
    %v310 = vpack.c.b16 %v299, %v298
    %v311 = vpack.c.b16 %v301, %v300
    %v312 = vpack.c.b16 %v303, %v302
    %v313 = vpack.c.b16 %v305, %v304
    %322 = vmatprep.subr.bf16.mxu0 0
    %323 = vmatpush1.bf16.msra.mxu0 %v313
    %324 = vmatprep.subr.bf16.mxu0 0
    %325 = vmatpush1.bf16.msra.mxu0 %v312
    %326 = vmatprep.subr.bf16.mxu0 0
    %327 = vmatpush1.bf16.msra.mxu0 %v311
    %328 = vmatprep.subr.bf16.mxu0 0
    %329 = vmatpush1.bf16.msra.mxu0 %v310
    %330 = vmatprep.subr.bf16.mxu0 0
    %331 = vmatpush1.bf16.msra.mxu0 %v309
    %332 = vmatprep.subr.bf16.mxu0 0
    %333 = vmatpush1.bf16.msra.mxu0 %v308
    %334 = vmatprep.subr.bf16.mxu0 0
    %335 = vmatpush1.bf16.msra.mxu0 %v307
    %336 = vmatprep.subr.bf16.mxu0 0
    %337 = vmatpush1.bf16.msra.mxu0 %v306
    %338 = vmatprep.subr.bf16.mxu0 0
    %339 = vmatpush2.bf16.msra.mxu0 0
    %340 = vmatprep.subr.bf16.mxu0 0
    %341 = vmatpush2.bf16.msra.mxu0 0
    %342 = vmatprep.subr.bf16.mxu0 0
    %343 = vmatpush2.bf16.msra.mxu0 0
    %344 = vmatprep.subr.bf16.mxu0 0
    %345 = vmatpush2.bf16.msra.mxu0 0
    %346 = vmatprep.subr.bf16.mxu0 0
    %347 = vmatpush2.bf16.msra.mxu0 0
    %348 = vmatprep.subr.bf16.mxu0 0
    %349 = vmatpush2.bf16.msra.mxu0 0
    %350 = vmatprep.subr.bf16.mxu0 0
    %351 = vmatpush2.bf16.msra.mxu0 0
    %352 = vmatprep.subr.bf16.mxu0 0
    %353 = vmatpush2.bf16.msra.mxu0 0
    %354 = vmatprep.mubr.bf16.mxu0 0
    %355 = vmatmul.mubr.bf16.gmra.mxu0 %v40
    %v356 = vpop.f32.mrf.mxu0
    %v357 = vadd.f32 0.0, %v356
    %v358 = vpop.f32.mrf.mxu0
    %v359 = vpop.f32.mrf.mxu0
    %v360 = vpop.f32.mrf.mxu0
    %361 = vdwg.mxu0
    %v362 = vadd.f32 %v256, %v357
    %363 = vst [vmem:[#allocation2 + $0x4] sm:$0x3] %v362
    %v364 = vld [vmem:[#allocation2 + $0x6] sm:$0x3]
    %s365 = scalar_lea.vmem [#allocation3], 192
    %v366 = vld [vmem:[%s365] sm:$0xf]
    %v367 = vld [vmem:[%s365 + $0x4] sm:$0xf]
    %v368 = vld [vmem:[%s365 + $0x8] sm:$0xf]
    %v369 = vld [vmem:[%s365 + $0xc] sm:$0xf]
    %v370 = vld [vmem:[%s365 + $0x10] sm:$0xf]
    %v371 = vld [vmem:[%s365 + $0x14] sm:$0xf]
    %v372 = vld [vmem:[%s365 + $0x18] sm:$0xf]
    %v373 = vld [vmem:[%s365 + $0x1c] sm:$0xf]
    %v374 = vld [vmem:[%s365 + $0x20] sm:$0xf]
    %v375 = vld [vmem:[%s365 + $0x24] sm:$0xf]
    %v376 = vld [vmem:[%s365 + $0x28] sm:$0xf]
    %v377 = vld [vmem:[%s365 + $0x2c] sm:$0xf]
    %v378 = vld [vmem:[%s365 + $0x30] sm:$0xf]
    %v379 = vld [vmem:[%s365 + $0x34] sm:$0xf]
    %v380 = vld [vmem:[%s365 + $0x38] sm:$0xf]
    %v381 = vld [vmem:[%s365 + $0x3c] sm:$0xf]
    %v398 = vunpack.c.l.b16 %v366
    %v399 = vunpack.c.l.b16 %v367
    %v400 = vunpack.c.l.b16 %v368
    %v401 = vunpack.c.l.b16 %v369
    %v402 = vunpack.c.l.b16 %v370
    %v403 = vunpack.c.l.b16 %v371
    %v404 = vunpack.c.l.b16 %v372
    %v405 = vunpack.c.l.b16 %v373
    %v406 = vunpack.c.l.b16 %v374
    %v407 = vunpack.c.l.b16 %v375
    %v408 = vunpack.c.l.b16 %v376
    %v409 = vunpack.c.l.b16 %v377
    %v410 = vunpack.c.l.b16 %v378
    %v411 = vunpack.c.l.b16 %v379
    %v412 = vunpack.c.l.b16 %v380
    %v413 = vunpack.c.l.b16 %v381
    %v414 = vpack.c.b16 %v399, %v398
    %v415 = vpack.c.b16 %v401, %v400
    %v416 = vpack.c.b16 %v403, %v402
    %v417 = vpack.c.b16 %v405, %v404
    %v418 = vpack.c.b16 %v407, %v406
    %v419 = vpack.c.b16 %v409, %v408
    %v420 = vpack.c.b16 %v411, %v410
    %v421 = vpack.c.b16 %v413, %v412
    %430 = vmatprep.subr.bf16.mxu0 0
    %431 = vmatpush1.bf16.msra.mxu0 %v421
    %432 = vmatprep.subr.bf16.mxu0 0
    %433 = vmatpush1.bf16.msra.mxu0 %v420
    %434 = vmatprep.subr.bf16.mxu0 0
    %435 = vmatpush1.bf16.msra.mxu0 %v419
    %436 = vmatprep.subr.bf16.mxu0 0
    %437 = vmatpush1.bf16.msra.mxu0 %v418
    %438 = vmatprep.subr.bf16.mxu0 0
    %439 = vmatpush1.bf16.msra.mxu0 %v417
    %440 = vmatprep.subr.bf16.mxu0 0
    %441 = vmatpush1.bf16.msra.mxu0 %v416
    %442 = vmatprep.subr.bf16.mxu0 0
    %443 = vmatpush1.bf16.msra.mxu0 %v415
    %444 = vmatprep.subr.bf16.mxu0 0
    %445 = vmatpush1.bf16.msra.mxu0 %v414
    %446 = vmatprep.subr.bf16.mxu0 0
    %447 = vmatpush2.bf16.msra.mxu0 0
    %448 = vmatprep.subr.bf16.mxu0 0
    %449 = vmatpush2.bf16.msra.mxu0 0
    %450 = vmatprep.subr.bf16.mxu0 0
    %451 = vmatpush2.bf16.msra.mxu0 0
    %452 = vmatprep.subr.bf16.mxu0 0
    %453 = vmatpush2.bf16.msra.mxu0 0
    %454 = vmatprep.subr.bf16.mxu0 0
    %455 = vmatpush2.bf16.msra.mxu0 0
    %456 = vmatprep.subr.bf16.mxu0 0
    %457 = vmatpush2.bf16.msra.mxu0 0
    %458 = vmatprep.subr.bf16.mxu0 0
    %459 = vmatpush2.bf16.msra.mxu0 0
    %460 = vmatprep.subr.bf16.mxu0 0
    %461 = vmatpush2.bf16.msra.mxu0 0
    %462 = vmatprep.mubr.bf16.mxu0 0
    %463 = vmatmul.mubr.bf16.gmra.mxu0 %v40
    %v464 = vpop.f32.mrf.mxu0
    %v465 = vadd.f32 0.0, %v464
    %v466 = vpop.f32.mrf.mxu0
    %v467 = vpop.f32.mrf.mxu0
    %v468 = vpop.f32.mrf.mxu0
    %469 = vdwg.mxu0
    %v470 = vadd.f32 %v364, %v465
    %471 = vst [vmem:[#allocation2 + $0x6] sm:$0x3] %v470
    // Predicated region
    $region30: #{forward.1} parent=1 // pred_check
      %p472 = pneg %p35
    $region31: #{forward.1} parent=1 // pred_check_branch
      %474 = sbr.rel (%p472) target = $region33
    $region32: #{forward.1} parent=1 // pred_region
      %v475 = vld [vmem:[#allocation2] sm:$0xff]
      %v476 = vld [vmem:[%s2] sm:$0xf]
      %v478 = vlaneseq
      %v479 = vshrl.u32 %v478, 7
      %v480 = vsub.s32 0, %v479
      %v481 = vrot.slane %v476, %v480
      %v482 = vlaneseq
      %v483 = vshrl.u32 %v482, 7
      %v484 = vsub.s32 1, %v483
      %v485 = vrot.slane %v476, %v484
      %v486 = vlaneseq
      %v487 = vshrl.u32 %v486, 7
      %v488 = vsub.s32 2, %v487
      %v489 = vrot.slane %v476, %v488
      %v490 = vlaneseq
      %v491 = vshrl.u32 %v490, 7
      %v492 = vsub.s32 3, %v491
      %v493 = vrot.slane %v476, %v492
      %v494 = vcombine.low %v481, %v485
      %v495 = vcombine.low %v489, %v493
      %v497 = vunpack.c.l.s4 1983009808
      %v498 = vunpack.c.0.s8 %v497
      %v499 = vlaneseq
      %v500 = vshrl.u32 %v499, 7
      %v501 = vsub.s32 %v498, %v500
      %v502 = vrot.slane %v494, %v501
      %v504 = vunpack.c.l.s4 1983009808
      %v505 = vunpack.c.0.s8 %v504
      %v506 = vlaneseq
      %v507 = vshrl.u32 %v506, 7
      %v508 = vsub.s32 %v505, %v507
      %v509 = vrot.slane %v495, %v508
      %v510 = vcombine.low %v502, %v509
      %v512 = vadd.f32 %v475, %v510
      %v513 = vld [vmem:[%s3] sm:$0x1]
      %v514 = vld [vmem:[%s4] sm:$0x1]
      %vm515 = vcmask 1041408
      %v516 = vsel %vm515, %v512, 0.0
      %517 = vadd.xlane.f32.xlu0 %v516
      %v518 = vpop.xlane.xlu0 %517
      %v519 = vrcp.pop 128.0
      %v520 = vmul.f32 %v518, %v519
      %v521 = vsub.f32 %v512, %v520
      %v522 = vmul.f32 %v521, %v521
      %v523 = vsel %vm515, %v522, 0.0
      %524 = vadd.xlane.f32.xlu0 %v523
      %v525 = vpop.xlane.xlu0 %524
      %v526 = vmul.f32 %v525, %v519
      %v527 = vadd.f32 %v526, 1e-05
      %v528 = vrsqrt.pop %v527
      %v529 = vmul.f32 %v521, %v528
      %v531 = vlaneseq
      %v532 = vshrl.u32 %v531, 7
      %v533 = vsub.s32 0, %v532
      %v534 = vrot.slane %v513, %v533
      %v536 = vmul.f32 %v529, %v534
      %v538 = vlaneseq
      %v539 = vshrl.u32 %v538, 7
      %v540 = vsub.s32 0, %v539
      %v541 = vrot.slane %v514, %v540
      %v543 = vadd.f32 %v536, %v541
      %v544 = vpack.c.bf16 %v543, %v543
      %545 = vst [vmem:[%s5] sm:$0x1] %v544
      %v548 = vunpack.c.l.s4 1983009808
      %v549 = vunpack.c.0.s8 %v548
      %v550 = vlaneseq
      %v551 = vshrl.u32 %v550, 7
      %v552 = vsub.s32 %v549, %v551
      %v553 = vrot.slane %v512, %v552
      %v554 = vcombine.high %v553, %v553
      %v556 = vsel %vm515, %v554, 0.0
      %557 = vadd.xlane.f32.xlu0 %v556
      %v558 = vpop.xlane.xlu0 %557
      %v559 = vmul.f32 %v558, %v519
      %v560 = vrot.slane %v512, 2
      %v562 = vsub.f32 %v560, %v559
      %v563 = vmul.f32 %v562, %v562
      %v564 = vsel %vm515, %v563, 0.0
      %565 = vadd.xlane.f32.xlu0 %v564
      %v566 = vpop.xlane.xlu0 %565
      %v567 = vmul.f32 %v566, %v519
      %v568 = vadd.f32 %v567, 1e-05
      %v569 = vrsqrt.pop %v568
      %v570 = vmul.f32 %v562, %v569
      %v571 = vmul.f32 %v570, %v534
      %v572 = vadd.f32 %v571, %v541
      %v573 = vpack.c.bf16 %v572, %v572
      %574 = vst [vmem:[%s5 + $0x1] sm:$0x1] %v573
      %v575 = vcombine.high %v512, %v512
      %v577 = vunpack.c.l.s4 1983009808
      %v578 = vunpack.c.0.s8 %v577
      %v579 = vlaneseq
      %v580 = vshrl.u32 %v579, 7
      %v581 = vsub.s32 %v578, %v580
      %v582 = vrot.slane %v575, %v581
      %v584 = vsel %vm515, %v582, 0.0
      %585 = vadd.xlane.f32.xlu0 %v584
      %v586 = vpop.xlane.xlu0 %585
      %v587 = vmul.f32 %v586, %v519
      %v588 = vrot.slane %v512, 4
      %v590 = vsub.f32 %v588, %v587
      %v591 = vmul.f32 %v590, %v590
      %v592 = vsel %vm515, %v591, 0.0
      %593 = vadd.xlane.f32.xlu0 %v592
      %v594 = vpop.xlane.xlu0 %593
      %v595 = vmul.f32 %v594, %v519
      %v596 = vadd.f32 %v595, 1e-05
      %v597 = vrsqrt.pop %v596
      %v598 = vmul.f32 %v590, %v597
      %v599 = vmul.f32 %v598, %v534
      %v600 = vadd.f32 %v599, %v541
      %v601 = vpack.c.bf16 %v600, %v600
      %602 = vst [vmem:[%s5 + $0x2] sm:$0x1] %v601
      %v603 = vcombine.high %v582, %v582
      %v605 = vsel %vm515, %v603, 0.0
      %606 = vadd.xlane.f32.xlu0 %v605
      %v607 = vpop.xlane.xlu0 %606
      %v608 = vmul.f32 %v607, %v519
      %v609 = vrot.slane %v512, 6
      %v611 = vsub.f32 %v609, %v608
      %v612 = vmul.f32 %v611, %v611
      %v613 = vsel %vm515, %v612, 0.0
      %614 = vadd.xlane.f32.xlu0 %v613
      %v615 = vpop.xlane.xlu0 %614
      %v616 = vmul.f32 %v615, %v519
      %v617 = vadd.f32 %v616, 1e-05
      %v618 = vrsqrt.pop %v617
      %v619 = vmul.f32 %v611, %v618
      %v620 = vmul.f32 %v619, %v534
      %v621 = vadd.f32 %v620, %v541
      %v622 = vpack.c.bf16 %v621, %v621
      %623 = vst [vmem:[%s5 + $0x3] sm:$0x1] %v622
    $region33: #{forward.1} parent=1 // pred_fallthru
      _
    // Predicated region
    $region34: #{forward.1} parent=1 // pred_check
      _
    $region35: #{forward.1} parent=1 // pred_check_branch
      %625 = sbr.rel (0) target = $region37
    $region36: #{forward.1} parent=1 // pred_region
      _
    $region37: #{forward.1} parent=1 // pred_fallthru
      _
    // Predicated region
    $region38: #{forward.1} parent=1 // pred_check
      _
    $region39: #{forward.1} parent=1 // pred_check_branch
      %627 = sbr.rel (0) target = $region41
    $region40: #{forward.1} parent=1 // pred_region
      _
    $region41: #{forward.1} parent=1 // pred_fallthru
      _
    %628 = vsyncpa [#allocation4], 1

</llo_original>
